<compile_context>
chip_gen: v7x
topology: tpu7x:2x2x1
jax: 0.10.0
libtpu: 0.0.40
codegen_flags: <defaults>
</compile_context>

<pallas_src>
import functools
import math

import jax
import jax.numpy as jnp
from jax.experimental import pallas as pl
from jax.experimental.pallas import tpu as pltpu

_WIDTH = 512    # lane-dense last dim (multiple of 128)
_TILE_R = 512   # rows per tile: 512*512*4B = 1 MiB per f32 stream


def _round_up(n, m):
    return ((n + m - 1) // m) * m


def _slab_dims(total):
    """Returns (padded_rows, tile_rows) for a flattened (rows, _WIDTH) slab."""
    rows = -(-total // _WIDTH)
    if rows <= _TILE_R:
        # Single tile whose block equals the full array dims (always legal).
        return rows, rows
    rows_p = _round_up(rows, _TILE_R)
    return rows_p, _TILE_R


def _to_slab(x, rows_p):
    flat = x.reshape(-1)
    pad = rows_p * _WIDTH - flat.shape[0]
    if pad:
        flat = jnp.pad(flat, (0, pad))
    return flat.reshape(rows_p, _WIDTH)


def _from_slab(slab, shape):
    total = math.prod(shape)
    return slab.reshape(-1)[:total].reshape(shape)


# ----------------------------------------------------------------------------- kernels


def _gen_apply_kernel(u_ref, x_ref, keep_ref, y_ref, *, p, scale):
    """First forward: threshold uniforms -> int8 keep mask, and apply it: y = keep*scale*x."""
    keep = u_ref[...] >= jnp.float32(p)          # keep prob = 1 - p  (u in [0, 1))
    keep_ref[...] = keep.astype(jnp.int8)
    x = x_ref[...]
    y_ref[...] = x * (keep.astype(x.dtype) * jnp.asarray(scale, x.dtype))


def _apply_kernel(keep_ref, x_ref, y_ref, *, scale):
    """Steady-state forward (every SNN timestep): y = (keep * scale) * x."""
    x = x_ref[...]
    y_ref[...] = x * (keep_ref[...].astype(x.dtype) * jnp.asarray(scale, x.dtype))


# ----------------------------------------------------------------------------- wrappers


def generate_mask_and_apply(x, seed, p, scale):
    """Returns (keep_slab int8 (rows_p, WIDTH), y with x's shape/dtype)."""
    total = x.size
    rows_p, tile_r = _slab_dims(total)
    xs = _to_slab(x, rows_p)
    u = jax.random.uniform(jax.random.PRNGKey(seed), (rows_p, _WIDTH), dtype=jnp.float32)

    blk = lambda: pl.BlockSpec((tile_r, _WIDTH), lambda i: (i, 0))
    keep, y = pl.pallas_call(
        functools.partial(_gen_apply_kernel, p=p, scale=scale),
        out_shape=(jax.ShapeDtypeStruct((rows_p, _WIDTH), jnp.int8),
                   jax.ShapeDtypeStruct((rows_p, _WIDTH), x.dtype)),
        grid=(rows_p // tile_r,),
        in_specs=[blk(), blk()],
        out_specs=(blk(), blk()),
        compiler_params=pltpu.CompilerParams(dimension_semantics=("parallel",)),
    )(u, xs)
    return keep, _from_slab(y, x.shape)


def apply_mask(keep_slab, x, scale):
    """Hot path: y = mask * x with the cached int8 keep mask."""
    rows_p, _ = keep_slab.shape
    _, tile_r = _slab_dims(x.size)
    xs = _to_slab(x, rows_p)

    blk = lambda: pl.BlockSpec((tile_r, _WIDTH), lambda i: (i, 0))
    y = pl.pallas_call(
        functools.partial(_apply_kernel, scale=scale),
        out_shape=jax.ShapeDtypeStruct((rows_p, _WIDTH), x.dtype),
        grid=(rows_p // tile_r,),
        in_specs=[blk(), blk()],
        out_specs=blk(),
        compiler_params=pltpu.CompilerParams(dimension_semantics=("parallel",)),
    )(keep_slab, xs)
    return _from_slab(y, x.shape)


# ----------------------------------------------------------------------------- module


class DropoutLIF:
    """JAX/Pallas port of the stateful SNN dropout layer (mask persists across timesteps)."""

    def __init__(self, p, seed=0):
        assert 0.0 <= p < 1.0
        self.p = float(p)
        self.scale = float(math.trunc(1.0 / (1.0 - self.p)))  # .trunc() of the dropout scale
        self.seed = int(seed)
        self._keep = None        # int8 (rows_p, _WIDTH) padded slab, values in {0, 1}
        self._shape = None

    def reset_state(self):
        # PyTorch resets the mask to a scalar; we regenerate it lazily on the next forward.
        self._keep = None
        self._shape = None

    @property
    def mask(self):
        """The f32 mask (0 or trunc(1/(1-p))) in the input's shape, for inspection/tests."""
        if self._keep is None or self._shape is None:
            return None
        total = math.prod(self._shape)
        m = self._keep.reshape(-1)[:total].astype(jnp.float32) * jnp.float32(self.scale)
        return m.reshape(self._shape)

    def __call__(self, x):
        if self._keep is None or self._shape != tuple(x.shape):
            self._keep, y = generate_mask_and_apply(x, self.seed, self.p, self.scale)
            self._shape = tuple(x.shape)
            return y
        return apply_mask(self._keep, x, self.scale)


if __name__ == "__main__":
    key = jax.random.PRNGKey(0)
    B, C, H, W = 2, 4, 16, 16                    # NCHW like the PyTorch module
    x = jax.random.normal(key, (B, C, H, W), dtype=jnp.float32)

    layer = DropoutLIF(p=0.5, seed=0)
    layer.reset_state()

    y1 = layer(x)                                # generates mask + applies it (fused kernel)
    y2 = layer(x)                                # reuses cached int8 mask (apply kernel)
    jax.block_until_ready((y1, y2))

    mask = layer.mask
    scale = float(math.trunc(1.0 / (1.0 - layer.p)))
    # mask entries must be exactly 0 or trunc(1/(1-p))
    assert bool(jnp.all((mask == 0.0) | (mask == scale)))
    # forward must equal mask * x and be deterministic given the cached mask
    assert bool(jnp.allclose(y1, mask * x))
    assert bool(jnp.allclose(y1, y2))
    # sanity: drop rate roughly p
    drop_frac = float(jnp.mean(mask == 0.0))
    assert 0.3 < drop_frac < 0.7

    print("KERNEL_OK")
</pallas_src>

<mosaic_0001>
module attributes {stable_mosaic.version = 11 : i64} {
  func.func @_gen_apply_kernel(%arg0: i32, %arg1: memref<4x512xf32, #tpu.memory_space<vmem>>, %arg2: memref<4x512xf32, #tpu.memory_space<vmem>>, %arg3: memref<4x512xi8, #tpu.memory_space<vmem>>, %arg4: memref<4x512xf32, #tpu.memory_space<vmem>>) attributes {dimension_semantics = [#tpu.dimension_semantics<parallel>], iteration_bounds = array<i64: 1>, scalar_prefetch = 0 : i64, scratch_operands = 0 : i64, tpu.core_type = #tpu.core_type<tc>, window_params = [{transform_indices = @transform_0, window_bounds = array<i64: 4, 512>}, {transform_indices = @transform_1, window_bounds = array<i64: 4, 512>}, {transform_indices = @transform_2, window_bounds = array<i64: 4, 512>}, {transform_indices = @transform_3, window_bounds = array<i64: 4, 512>}]} {
    %c0 = arith.constant 0 : index
    %c0_0 = arith.constant 0 : index
    %0 = vector.load %arg1[%c0, %c0_0] : memref<4x512xf32, #tpu.memory_space<vmem>>, vector<4x512xf32>
    %cst = arith.constant 5.000000e-01 : f32
    %1 = vector.broadcast %cst : f32 to vector<4x512xf32>
    %2 = arith.cmpf oge, %0, %1 : vector<4x512xf32>
    %3 = arith.extui %2 : vector<4x512xi1> to vector<4x512xi8>
    %c0_1 = arith.constant 0 : index
    %c0_2 = arith.constant 0 : index
    %4 = vector.load %arg3[%c0_1, %c0_2] : memref<4x512xi8, #tpu.memory_space<vmem>>, vector<4x512xi8>
    tpu.vector_store %arg3[%c0_1, %c0_2], %3 {strides = array<i32>} : memref<4x512xi8, #tpu.memory_space<vmem>>, vector<4x512xi8>,
    %c0_3 = arith.constant 0 : index
    %c0_4 = arith.constant 0 : index
    %5 = vector.load %arg2[%c0_3, %c0_4] : memref<4x512xf32, #tpu.memory_space<vmem>>, vector<4x512xf32>
    %6 = arith.extui %2 : vector<4x512xi1> to vector<4x512xi32>
    %7 = arith.sitofp %6 : vector<4x512xi32> to vector<4x512xf32>
    %cst_5 = arith.constant 2.000000e+00 : f32
    %8 = vector.broadcast %cst_5 : f32 to vector<4x512xf32>
    %9 = arith.mulf %7, %8 : vector<4x512xf32>
    %10 = arith.mulf %5, %9 : vector<4x512xf32>
    %c0_6 = arith.constant 0 : index
    %c0_7 = arith.constant 0 : index
    %11 = vector.load %arg4[%c0_6, %c0_7] : memref<4x512xf32, #tpu.memory_space<vmem>>, vector<4x512xf32>
    tpu.vector_store %arg4[%c0_6, %c0_7], %10 {strides = array<i32>} : memref<4x512xf32, #tpu.memory_space<vmem>>, vector<4x512xf32>,
    return
  }
  func.func @transform_0(%arg0: i32) -> (i32, i32) {
    %c0_i32 = arith.constant 0 : i32
    %c0_i32_0 = arith.constant 0 : i32
    return %arg0, %c0_i32 : i32, i32
  }
  func.func @transform_1(%arg0: i32) -> (i32, i32) {
    %c0_i32 = arith.constant 0 : i32
    %c0_i32_0 = arith.constant 0 : i32
    return %arg0, %c0_i32 : i32, i32
  }
  func.func @transform_2(%arg0: i32) -> (i32, i32) {
    %c0_i32 = arith.constant 0 : i32
    %c0_i32_0 = arith.constant 0 : i32
    return %arg0, %c0_i32 : i32, i32
  }
  func.func @transform_3(%arg0: i32) -> (i32, i32) {
    %c0_i32 = arith.constant 0 : i32
    %c0_i32_0 = arith.constant 0 : i32
    return %arg0, %c0_i32 : i32, i32
  }
}

</mosaic_0001>

<llo_original>
// kernel: tpu_custom_call.1
$region0: #{tpu_custom_call.1}
  #allocation0 [shape = 'u32[]', space=smem, size = 0x4, offset = 0x4, fixed_abs, tag = 'smem constant byte address 0x4 - core index']
  #allocation1 [shape = 'u32[144,128]{1,0:T(1,128)}', space=vmem, size = 0x12000, scoped, tag = 'internal scratch']
  %s0 = inlined_call_operand.hbm [shape: f32[4,512], index: 0, kind: input, shape index: {}]
  %s1 = inlined_call_operand.hbm [shape: f32[4,512], index: 1, kind: input, shape index: {}]
  %s2 = inlined_call_operand.hbm [shape: s8[4,512], index: 2, kind: output, shape index: {0}]
  %s3 = inlined_call_operand.hbm [shape: f32[4,512], index: 3, kind: output, shape index: {1}]
  %4 = xla_tuple %s2, %s3
  %s5 = sld [smem:[#allocation0]]
  $region34: #{tpu_custom_call.1} parent=0
    _
  %s7 = ssub.s32 1, %s5
  %s8 = scalar_select 0, %s7, %s5
  $region1: #{tpu_custom_call.1} parent=0
    #allocation2 [shape = 'u8[8192]{0}', space=vmem, size = 0x2000, scoped, tag = 'input window, operand 0, single buffered']
    #allocation3 [shape = 's32[1]{0}', space=sflag, size = 0x4, scoped, tag = 'scoped memory for tpu_custom_call.1']
    #allocation4 [shape = 's32[1]{0}', space=sflag, size = 0x4, scoped, tag = 'scoped memory for tpu_custom_call.1']
    #allocation5 [shape = 'u8[8192]{0}', space=vmem, size = 0x2000, scoped, tag = 'input window, operand 1, single buffered']
    #allocation6 [shape = 's32[1]{0}', space=sflag, size = 0x4, scoped, tag = 'scoped memory for tpu_custom_call.1']
    #allocation7 [shape = 'u8[2048]{0}', space=vmem, size = 0x800, scoped, tag = 'output window, operand 0, single buffered']
    #allocation8 [shape = 'u8[8192]{0}', space=vmem, size = 0x2000, scoped, tag = 'output window, operand 1, single buffered']
    #allocation9 [shape = 's32[1]{0}', space=sflag, size = 0x4, scoped, tag = 'scoped memory for tpu_custom_call.1']
    %9 = vsyncpa [#allocation3], 0
    %10 = vsyncpa [#allocation6], 0
    %11 = vsyncpa [#allocation4], 0
    %12 = vsyncpa [#allocation9], 0
    // Predicated region
    $region2: #{tpu_custom_call.1} parent=1 // pred_check
      _
    $region3: #{tpu_custom_call.1} parent=1 // pred_check_branch
      %14 = sbr.rel (0) target = $region5
    $region4: #{tpu_custom_call.1} parent=1 // pred_region
      %s16 = ssub.s32 256, 256
      %17 = vsyncadd [#allocation3], %s16
      %s19 = sshll.u32 [#allocation2], 4
      %s20 = int_to_ptr.vmem [resolvable:$true] %s19
      %22 = dma.hbm_to_vmem [thread:$0]  %s0, 256, %s20, [#allocation3]
    $region5: #{tpu_custom_call.1} parent=1 // pred_fallthru
      _
    // Predicated region
    $region6: #{tpu_custom_call.1} parent=1 // pred_check
      _
    $region7: #{tpu_custom_call.1} parent=1 // pred_check_branch
      %24 = sbr.rel (0) target = $region9
    $region8: #{tpu_custom_call.1} parent=1 // pred_region
      %s26 = ssub.s32 256, 256
      %27 = vsyncadd [#allocation6], %s26
      %s29 = sshll.u32 [#allocation5], 4
      %s30 = int_to_ptr.vmem [resolvable:$true] %s29
      %32 = dma.hbm_to_vmem [thread:$0]  %s1, 256, %s30, [#allocation6]
    $region9: #{tpu_custom_call.1} parent=1 // pred_fallthru
      _
    // Predicated region
    $region10: #{tpu_custom_call.1} parent=1 // pred_check
      _
    $region11: #{tpu_custom_call.1} parent=1 // pred_check_branch
      %34 = sbr.rel (0) target = $region13
    $region12: #{tpu_custom_call.1} parent=1 // pred_region
      %35 = dma.done [#allocation3], 256
    $region13: #{tpu_custom_call.1} parent=1 // pred_fallthru
      _
    // Predicated region
    $region14: #{tpu_custom_call.1} parent=1 // pred_check
      _
    $region15: #{tpu_custom_call.1} parent=1 // pred_check_branch
      %37 = sbr.rel (0) target = $region17
    $region16: #{tpu_custom_call.1} parent=1 // pred_region
      %38 = dma.done [#allocation6], 256
    $region17: #{tpu_custom_call.1} parent=1 // pred_fallthru
      _
    %v41 = vld [vmem:[#allocation2] sm:$0xff]
    %v42 = vld [vmem:[#allocation2 + $0x8] sm:$0xff]
    %vm43 = vcmp.ge.f32.partialorder %v41, 0.5
    %vm44 = vcmp.ge.f32.partialorder %v42, 0.5
    %v45 = vsel %vm43, 1, 0
    %v46 = vsel %vm44, 1, 0
    %v47 = vpack.c.b16 %v46, %v45
    %v48 = vpack.c.b8 %v47, %v47
    %vm49 = vnez %v48
    %v50 = vsel %vm49, 16843009, 0
    %v52 = vunpack.c.l.s4 1966171168
    %v53 = vunpack.c.0.s8 %v52
    %v54 = vlaneseq
    %v55 = vshrl.u32 %v54, 7
    %v56 = vsub.s32 %v53, %v55
    %v57 = vrot.slane %v50, %v56
    %v58 = vcombine.high %v57, %v57
    %v60 = vunpack.c.l.s4 1966171168
    %v61 = vunpack.c.0.s8 %v60
    %v62 = vlaneseq
    %v63 = vshrl.u32 %v62, 7
    %v64 = vsub.s32 %v61, %v63
    %v65 = vrot.slane %v57, %v64
    %v67 = vunpack.c.l.s4 1966171168
    %v68 = vunpack.c.0.s8 %v67
    %v69 = vlaneseq
    %v70 = vshrl.u32 %v69, 7
    %v71 = vsub.s32 %v68, %v70
    %v72 = vrot.slane %v58, %v71
    %v73 = vcombine.high %v65, %v65
    %v74 = vcombine.high %v72, %v72
    %vm75 = vnez %v65
    %vm76 = vnez %v72
    %vm77 = vnez %v73
    %vm78 = vnez %v74
    %v79 = vsel %vm75, 16843009, 0
    %v80 = vsel %vm76, 16843009, 0
    %v81 = vsel %vm77, 16843009, 0
    %v82 = vsel %vm78, 16843009, 0
    %v83 = vcombine.low %v79, %v80
    %v84 = vcombine.low %v81, %v82
    %v86 = vunpack.c.l.s4 1966171168
    %v87 = vunpack.c.0.s8 %v86
    %v88 = vlaneseq
    %v89 = vshrl.u32 %v88, 7
    %v90 = vsub.s32 %v87, %v89
    %v91 = vrot.slane %v83, %v90
    %v93 = vunpack.c.l.s4 1966171168
    %v94 = vunpack.c.0.s8 %v93
    %v95 = vlaneseq
    %v96 = vshrl.u32 %v95, 7
    %v97 = vsub.s32 %v94, %v96
    %v98 = vrot.slane %v84, %v97
    %v99 = vcombine.low %v91, %v98
    %v101 = vunpack.c.l.s4 1966171168
    %v102 = vunpack.c.0.s8 %v101
    %v103 = vlaneseq
    %v104 = vshrl.u32 %v103, 7
    %v105 = vsub.s32 %v102, %v104
    %v106 = vrot.slane %v99, %v105
    %107 = vst [vmem:[#allocation7] sm:$0xf] %v106
    %v108 = vld [vmem:[#allocation5] sm:$0xff]
    %v109 = vld [vmem:[#allocation5 + $0x8] sm:$0xff]
    %v110 = vcvt.s32.f32 %v45
    %v111 = vcvt.s32.f32 %v46
    %v112 = vmul.f32 %v110, 2.0
    %v113 = vmul.f32 %v111, 2.0
    %v114 = vmul.f32 %v108, %v112
    %v115 = vmul.f32 %v109, %v113
    %116 = vst [vmem:[#allocation8] sm:$0xff] %v114
    %117 = vst [vmem:[#allocation8 + $0x8] sm:$0xff] %v115
    // Predicated region
    $region18: #{tpu_custom_call.1} parent=1 // pred_check
      _
    $region19: #{tpu_custom_call.1} parent=1 // pred_check_branch
      %119 = sbr.rel (0) target = $region21
    $region20: #{tpu_custom_call.1} parent=1 // pred_region
      %s121 = ssub.s32 64, 64
      %122 = vsyncadd [#allocation4], %s121
      %s124 = sshll.u32 [#allocation7], 4
      %s125 = int_to_ptr.vmem [resolvable:$true] %s124
      %127 = dma.vmem_to_hbm [thread:$0]  %s125, 64, %s2, [#allocation4]
    $region21: #{tpu_custom_call.1} parent=1 // pred_fallthru
      _
    // Predicated region
    $region22: #{tpu_custom_call.1} parent=1 // pred_check
      _
    $region23: #{tpu_custom_call.1} parent=1 // pred_check_branch
      %129 = sbr.rel (0) target = $region25
    $region24: #{tpu_custom_call.1} parent=1 // pred_region
      %s131 = ssub.s32 256, 256
      %132 = vsyncadd [#allocation9], %s131
      %s134 = sshll.u32 [#allocation8], 4
      %s135 = int_to_ptr.vmem [resolvable:$true] %s134
      %137 = dma.vmem_to_hbm [thread:$0]  %s135, 256, %s3, [#allocation9]
    $region25: #{tpu_custom_call.1} parent=1 // pred_fallthru
      _
    // Predicated region
    $region26: #{tpu_custom_call.1} parent=1 // pred_check
      _
    $region27: #{tpu_custom_call.1} parent=1 // pred_check_branch
      %139 = sbr.rel (0) target = $region29
    $region28: #{tpu_custom_call.1} parent=1 // pred_region
      %140 = dma.done [#allocation4], 64
    $region29: #{tpu_custom_call.1} parent=1 // pred_fallthru
      _
    // Predicated region
    $region30: #{tpu_custom_call.1} parent=1 // pred_check
      _
    $region31: #{tpu_custom_call.1} parent=1 // pred_check_branch
      %142 = sbr.rel (0) target = $region33
    $region32: #{tpu_custom_call.1} parent=1 // pred_region
      %143 = dma.done [#allocation9], 256
    $region33: #{tpu_custom_call.1} parent=1 // pred_fallthru
      _
    %144 = vsyncpa [#allocation3], 1
    %145 = vsyncpa [#allocation6], 1
    %146 = vsyncpa [#allocation4], 1
    %147 = vsyncpa [#allocation9], 1

</llo_original>
